<compile_context>
chip_gen: v6e
topology: v6e:2x2x1
jax: 0.10.0
libtpu: 0.0.40
codegen_flags: <defaults>
</compile_context>

<pallas_src>
import functools

import jax
import jax.numpy as jnp
from jax.experimental import pallas as pl
from jax.experimental.pallas import tpu as pltpu


HIDDEN_SIZE = 20
INPUT_SIZE = 28
NUM_LAYERS = 2


def _lstm_block_kernel(x_ref, h_ref, c_ref, *rest, num_layers, hidden_size,
                       input_size):
    """Fused forward of `num_layers` stacked LSTM cells (one timestep).

    x_ref:  (B, D_in)       layer-0 input
    h_ref:  (L, B, H)       previous hidden states
    c_ref:  (L, B, H)       previous cell states
    rest:   L stacked weights [(D_layer + H, 4H)], L biases [(1, 4H)],
            outputs h_out (L, B, H) and c_out (L, B, H),
            then VMEM scratch z (B, D_in + H) used to stage [x, h].
    """
    H = hidden_size
    w_refs = rest[:num_layers]
    b_refs = rest[num_layers:2 * num_layers]
    h_out_ref = rest[2 * num_layers]
    c_out_ref = rest[2 * num_layers + 1]
    z_ref = rest[2 * num_layers + 2]

    x_cur = x_ref[...]          # (B, D_in) for layer 0
    d_in = input_size
    for i in range(num_layers):
        # Stage [x_cur, h_i] contiguously so the gate pre-activation is one
        # MXU matmul against the stacked weight [W_ih^T; W_hh^T].
        z_ref[:, 0:d_in] = x_cur
        z_ref[:, d_in:d_in + H] = h_ref[i]
        gates = (
            jnp.dot(z_ref[:, 0:d_in + H], w_refs[i][...],
                    preferred_element_type=jnp.float32)
            + b_refs[i][...]
        )                        # (B, 4H)

        # One sigmoid + one tanh over the whole gate block, then lane-slice.
        sig = jax.nn.sigmoid(gates)
        tg = jnp.tanh(gates)
        i_g = sig[:, 0 * H:1 * H]
        f_g = sig[:, 1 * H:2 * H]
        g_g = tg[:, 2 * H:3 * H]
        o_g = sig[:, 3 * H:4 * H]

        c_new = f_g * c_ref[i] + i_g * g_g
        h_new = o_g * jnp.tanh(c_new)

        h_out_ref[i] = h_new
        c_out_ref[i] = c_new

        x_cur = h_new            # feeds layer i+1
        d_in = H


def lstm_block_forward(x, h_prev, c_prev, params):
    """Matches LSTMBlock.forward.

    x:      (B, input_size)
    h_prev: (num_layers, B, H)
    c_prev: (num_layers, B, H)
    params: list of (w_stacked, b) per layer where
            w_stacked = [W_ih^T; W_hh^T] : (D_layer + H, 4H)
            b         = b_ih + b_hh      : (1, 4H)
    returns (hn, cn), each (num_layers, B, H)
    """
    num_layers, B, H = h_prev.shape
    D_in = x.shape[1]

    # Pad batch to a full sublane group so loads/stores are sublane-dense.
    B_pad = ((B + 7) // 8) * 8
    pad = B_pad - B
    if pad:
        x = jnp.pad(x, ((0, pad), (0, 0)))
        h_prev = jnp.pad(h_prev, ((0, 0), (0, pad), (0, 0)))
        c_prev = jnp.pad(c_prev, ((0, 0), (0, pad), (0, 0)))

    w_stacked = [p[0] for p in params]
    biases = [p[1] for p in params]
    z_width = D_in + H   # widest staged [x, h] operand (layer 0)

    kernel = functools.partial(_lstm_block_kernel, num_layers=num_layers,
                               hidden_size=H, input_size=D_in)

    def full(shape):
        return pl.BlockSpec(shape, lambda: (0,) * len(shape))

    in_specs = (
        [full((B_pad, D_in)),
         full((num_layers, B_pad, H)),
         full((num_layers, B_pad, H))]
        + [full(w.shape) for w in w_stacked]
        + [full(b.shape) for b in biases]
    )
    out_specs = (
        full((num_layers, B_pad, H)),
        full((num_layers, B_pad, H)),
    )

    hn, cn = pl.pallas_call(
        kernel,
        out_shape=(
            jax.ShapeDtypeStruct((num_layers, B_pad, H), jnp.float32),
            jax.ShapeDtypeStruct((num_layers, B_pad, H), jnp.float32),
        ),
        grid=(),
        in_specs=in_specs,
        out_specs=out_specs,
        scratch_shapes=[pltpu.VMEM((B_pad, z_width), jnp.float32)],
    )(x, h_prev, c_prev, *w_stacked, *biases)

    if pad:
        hn = hn[:, :B, :]
        cn = cn[:, :B, :]
    return hn, cn


def _lstm_cell_ref(x, h, c, w_stacked, b):
    gates = jnp.concatenate([x, h], axis=1) @ w_stacked + b
    H = h.shape[1]
    i_g = jax.nn.sigmoid(gates[:, 0 * H:1 * H])
    f_g = jax.nn.sigmoid(gates[:, 1 * H:2 * H])
    g_g = jnp.tanh(gates[:, 2 * H:3 * H])
    o_g = jax.nn.sigmoid(gates[:, 3 * H:4 * H])
    c_new = f_g * c + i_g * g_g
    h_new = o_g * jnp.tanh(c_new)
    return h_new, c_new


def make_params(key, input_size, hidden_size, num_layers):
    """Deterministic parameter init (uniform +-1/sqrt(H), like PyTorch's
    default LSTMCell init; exact torch RNG stream is not reproduced).
    Weights are stored pre-stacked as [W_ih^T; W_hh^T] of shape (D+H, 4H)."""
    params = []
    bound = 1.0 / jnp.sqrt(jnp.float32(hidden_size))
    d_in = input_size
    for _ in range(num_layers):
        key, k1, k2, k3, k4 = jax.random.split(key, 5)
        w_ih = jax.random.uniform(k1, (4 * hidden_size, d_in),
                                  minval=-bound, maxval=bound,
                                  dtype=jnp.float32)
        w_hh = jax.random.uniform(k2, (4 * hidden_size, hidden_size),
                                  minval=-bound, maxval=bound,
                                  dtype=jnp.float32)
        b_ih = jax.random.uniform(k3, (4 * hidden_size,),
                                  minval=-bound, maxval=bound,
                                  dtype=jnp.float32)
        b_hh = jax.random.uniform(k4, (4 * hidden_size,),
                                  minval=-bound, maxval=bound,
                                  dtype=jnp.float32)
        w_stk = jnp.concatenate([w_ih.T, w_hh.T], axis=0)  # (d_in + H, 4H)
        params.append((w_stk, (b_ih + b_hh)[None, :]))
        d_in = hidden_size
    return params


if __name__ == "__main__":
    key = jax.random.PRNGKey(0)
    k_x, k_h, k_c, k_p = jax.random.split(key, 4)

    batch = 2
    x = jax.random.normal(k_x, (batch, INPUT_SIZE), dtype=jnp.float32)
    h_prev = jax.random.normal(k_h, (NUM_LAYERS, batch, HIDDEN_SIZE),
                               dtype=jnp.float32)
    c_prev = jax.random.normal(k_c, (NUM_LAYERS, batch, HIDDEN_SIZE),
                               dtype=jnp.float32)

    params = make_params(k_p, INPUT_SIZE, HIDDEN_SIZE, NUM_LAYERS)

    fwd = jax.jit(lstm_block_forward)
    hn, cn = fwd(x, h_prev, c_prev, params)
    hn = jax.block_until_ready(hn)
    cn = jax.block_until_ready(cn)

    # Pure-JAX reference check of the same math.
    x_cur = x
    hn_ref, cn_ref = [], []
    for i in range(NUM_LAYERS):
        h_i, c_i = _lstm_cell_ref(x_cur, h_prev[i], c_prev[i], *params[i])
        hn_ref.append(h_i)
        cn_ref.append(c_i)
        x_cur = h_i
    hn_ref = jnp.stack(hn_ref)
    cn_ref = jnp.stack(cn_ref)

    assert hn.shape == (NUM_LAYERS, batch, HIDDEN_SIZE)
    assert cn.shape == (NUM_LAYERS, batch, HIDDEN_SIZE)
    assert jnp.allclose(hn, hn_ref, atol=1e-5, rtol=1e-5)
    assert jnp.allclose(cn, cn_ref, atol=1e-5, rtol=1e-5)

    print("KERNEL_OK")
</pallas_src>

<mosaic_0001>
module attributes {stable_mosaic.version = 11 : i64} {
  func.func @_lstm_block_kernel(%arg0: memref<8x28xf32, #tpu.memory_space<vmem>>, %arg1: memref<2x8x20xf32, #tpu.memory_space<vmem>>, %arg2: memref<2x8x20xf32, #tpu.memory_space<vmem>>, %arg3: memref<48x80xf32, #tpu.memory_space<vmem>>, %arg4: memref<40x80xf32, #tpu.memory_space<vmem>>, %arg5: memref<1x80xf32, #tpu.memory_space<vmem>>, %arg6: memref<1x80xf32, #tpu.memory_space<vmem>>, %arg7: memref<2x8x20xf32, #tpu.memory_space<vmem>>, %arg8: memref<2x8x20xf32, #tpu.memory_space<vmem>>, %arg9: memref<8x48xf32, #tpu.memory_space<vmem>>) attributes {dimension_semantics = [], scalar_prefetch = 0 : i64, scratch_operands = 1 : i64, tpu.core_type = #tpu.core_type<tc>} {
    %c0 = arith.constant 0 : index
    %c0_0 = arith.constant 0 : index
    %0 = vector.load %arg0[%c0, %c0_0] : memref<8x28xf32, #tpu.memory_space<vmem>>, vector<8x28xf32>
    %c0_1 = arith.constant 0 : index
    %c0_2 = arith.constant 0 : index
    %1 = vector.load %arg9[%c0_1, %c0_2] : memref<8x48xf32, #tpu.memory_space<vmem>>, vector<8x28xf32>
    tpu.vector_store %arg9[%c0_1, %c0_2], %0 {strides = array<i32>} : memref<8x48xf32, #tpu.memory_space<vmem>>, vector<8x28xf32>,
    %c0_3 = arith.constant 0 : index
    %c0_4 = arith.constant 0 : index
    %c0_5 = arith.constant 0 : index
    %2 = vector.load %arg1[%c0_3, %c0_4, %c0_5] : memref<2x8x20xf32, #tpu.memory_space<vmem>>, vector<1x8x20xf32>
    %3 = vector.shape_cast %2 : vector<1x8x20xf32> to vector<8x20xf32>
    %c0_6 = arith.constant 0 : index
    %c28 = arith.constant 28 : index
    %4 = vector.load %arg9[%c0_6, %c28] : memref<8x48xf32, #tpu.memory_space<vmem>>, vector<8x20xf32>
    tpu.vector_store %arg9[%c0_6, %c28], %3 {strides = array<i32>} : memref<8x48xf32, #tpu.memory_space<vmem>>, vector<8x20xf32>,
    %c0_7 = arith.constant 0 : index
    %c0_8 = arith.constant 0 : index
    %5 = vector.load %arg9[%c0_7, %c0_8] : memref<8x48xf32, #tpu.memory_space<vmem>>, vector<8x48xf32>
    %c0_9 = arith.constant 0 : index
    %c0_10 = arith.constant 0 : index
    %6 = vector.load %arg3[%c0_9, %c0_10] : memref<48x80xf32, #tpu.memory_space<vmem>>, vector<48x80xf32>
    %cst = arith.constant dense<0.000000e+00> : vector<8x80xf32>
    %7 = tpu.matmul %5, %6, %cst {dimension_numbers = #tpu.dot_dimension_numbers<[1], [0], [0], [1], [0, 0, 1, 1], [], []>} : vector<8x48xf32>, vector<48x80xf32>, vector<8x80xf32> -> vector<8x80xf32>
    %c0_11 = arith.constant 0 : index
    %c0_12 = arith.constant 0 : index
    %8 = vector.load %arg5[%c0_11, %c0_12] : memref<1x80xf32, #tpu.memory_space<vmem>>, vector<1x80xf32>
    %9 = vector.broadcast %8 : vector<1x80xf32> to vector<8x80xf32>
    %10 = arith.addf %7, %9 : vector<8x80xf32>
    %11 = arith.negf %10 : vector<8x80xf32>
    %12 = math.exp %11 : vector<8x80xf32>
    %cst_13 = arith.constant 1.000000e+00 : f32
    %13 = vector.broadcast %cst_13 : f32 to vector<8x80xf32>
    %14 = arith.addf %13, %12 : vector<8x80xf32>
    %15 = arith.divf %13, %14 : vector<8x80xf32>
    %16 = math.tanh %10 : vector<8x80xf32>
    %17 = vector.extract_strided_slice %15 {offsets = [0, 0], sizes = [8, 20], strides = [1, 1]} : vector<8x80xf32> to vector<8x20xf32>
    %18 = vector.extract_strided_slice %15 {offsets = [0, 20], sizes = [8, 20], strides = [1, 1]} : vector<8x80xf32> to vector<8x20xf32>
    %19 = vector.extract_strided_slice %16 {offsets = [0, 40], sizes = [8, 20], strides = [1, 1]} : vector<8x80xf32> to vector<8x20xf32>
    %20 = vector.extract_strided_slice %15 {offsets = [0, 60], sizes = [8, 20], strides = [1, 1]} : vector<8x80xf32> to vector<8x20xf32>
    %c0_14 = arith.constant 0 : index
    %c0_15 = arith.constant 0 : index
    %c0_16 = arith.constant 0 : index
    %21 = vector.load %arg2[%c0_14, %c0_15, %c0_16] : memref<2x8x20xf32, #tpu.memory_space<vmem>>, vector<1x8x20xf32>
    %22 = vector.shape_cast %21 : vector<1x8x20xf32> to vector<8x20xf32>
    %23 = arith.mulf %18, %22 : vector<8x20xf32>
    %24 = arith.mulf %17, %19 : vector<8x20xf32>
    %25 = arith.addf %23, %24 : vector<8x20xf32>
    %26 = math.tanh %25 : vector<8x20xf32>
    %27 = arith.mulf %20, %26 : vector<8x20xf32>
    %c0_17 = arith.constant 0 : index
    %c0_18 = arith.constant 0 : index
    %c0_19 = arith.constant 0 : index
    %28 = vector.load %arg7[%c0_17, %c0_18, %c0_19] : memref<2x8x20xf32, #tpu.memory_space<vmem>>, vector<1x8x20xf32>
    %29 = vector.shape_cast %28 : vector<1x8x20xf32> to vector<8x20xf32>
    %30 = vector.shape_cast %27 : vector<8x20xf32> to vector<1x8x20xf32>
    tpu.vector_store %arg7[%c0_17, %c0_18, %c0_19], %30 {strides = array<i32>} : memref<2x8x20xf32, #tpu.memory_space<vmem>>, vector<1x8x20xf32>,
    %c0_20 = arith.constant 0 : index
    %c0_21 = arith.constant 0 : index
    %c0_22 = arith.constant 0 : index
    %31 = vector.load %arg8[%c0_20, %c0_21, %c0_22] : memref<2x8x20xf32, #tpu.memory_space<vmem>>, vector<1x8x20xf32>
    %32 = vector.shape_cast %31 : vector<1x8x20xf32> to vector<8x20xf32>
    %33 = vector.shape_cast %25 : vector<8x20xf32> to vector<1x8x20xf32>
    tpu.vector_store %arg8[%c0_20, %c0_21, %c0_22], %33 {strides = array<i32>} : memref<2x8x20xf32, #tpu.memory_space<vmem>>, vector<1x8x20xf32>,
    %c0_23 = arith.constant 0 : index
    %c0_24 = arith.constant 0 : index
    %34 = vector.load %arg9[%c0_23, %c0_24] : memref<8x48xf32, #tpu.memory_space<vmem>>, vector<8x20xf32>
    tpu.vector_store %arg9[%c0_23, %c0_24], %27 {strides = array<i32>} : memref<8x48xf32, #tpu.memory_space<vmem>>, vector<8x20xf32>,
    %c1 = arith.constant 1 : index
    %c0_25 = arith.constant 0 : index
    %c0_26 = arith.constant 0 : index
    %35 = vector.load %arg1[%c1, %c0_25, %c0_26] : memref<2x8x20xf32, #tpu.memory_space<vmem>>, vector<1x8x20xf32>
    %36 = vector.shape_cast %35 : vector<1x8x20xf32> to vector<8x20xf32>
    %c0_27 = arith.constant 0 : index
    %c20 = arith.constant 20 : index
    %37 = vector.load %arg9[%c0_27, %c20] : memref<8x48xf32, #tpu.memory_space<vmem>>, vector<8x20xf32>
    tpu.vector_store %arg9[%c0_27, %c20], %36 {strides = array<i32>} : memref<8x48xf32, #tpu.memory_space<vmem>>, vector<8x20xf32>,
    %c0_28 = arith.constant 0 : index
    %c0_29 = arith.constant 0 : index
    %38 = vector.load %arg9[%c0_28, %c0_29] : memref<8x48xf32, #tpu.memory_space<vmem>>, vector<8x40xf32>
    %c0_30 = arith.constant 0 : index
    %c0_31 = arith.constant 0 : index
    %39 = vector.load %arg4[%c0_30, %c0_31] : memref<40x80xf32, #tpu.memory_space<vmem>>, vector<40x80xf32>
    %cst_32 = arith.constant dense<0.000000e+00> : vector<8x80xf32>
    %40 = tpu.matmul %38, %39, %cst_32 {dimension_numbers = #tpu.dot_dimension_numbers<[1], [0], [0], [1], [0, 0, 1, 1], [], []>} : vector<8x40xf32>, vector<40x80xf32>, vector<8x80xf32> -> vector<8x80xf32>
    %c0_33 = arith.constant 0 : index
    %c0_34 = arith.constant 0 : index
    %41 = vector.load %arg6[%c0_33, %c0_34] : memref<1x80xf32, #tpu.memory_space<vmem>>, vector<1x80xf32>
    %42 = vector.broadcast %41 : vector<1x80xf32> to vector<8x80xf32>
    %43 = arith.addf %40, %42 : vector<8x80xf32>
    %44 = arith.negf %43 : vector<8x80xf32>
    %45 = math.exp %44 : vector<8x80xf32>
    %cst_35 = arith.constant 1.000000e+00 : f32
    %46 = vector.broadcast %cst_35 : f32 to vector<8x80xf32>
    %47 = arith.addf %46, %45 : vector<8x80xf32>
    %48 = arith.divf %46, %47 : vector<8x80xf32>
    %49 = math.tanh %43 : vector<8x80xf32>
    %50 = vector.extract_strided_slice %48 {offsets = [0, 0], sizes = [8, 20], strides = [1, 1]} : vector<8x80xf32> to vector<8x20xf32>
    %51 = vector.extract_strided_slice %48 {offsets = [0, 20], sizes = [8, 20], strides = [1, 1]} : vector<8x80xf32> to vector<8x20xf32>
    %52 = vector.extract_strided_slice %49 {offsets = [0, 40], sizes = [8, 20], strides = [1, 1]} : vector<8x80xf32> to vector<8x20xf32>
    %53 = vector.extract_strided_slice %48 {offsets = [0, 60], sizes = [8, 20], strides = [1, 1]} : vector<8x80xf32> to vector<8x20xf32>
    %c1_36 = arith.constant 1 : index
    %c0_37 = arith.constant 0 : index
    %c0_38 = arith.constant 0 : index
    %54 = vector.load %arg2[%c1_36, %c0_37, %c0_38] : memref<2x8x20xf32, #tpu.memory_space<vmem>>, vector<1x8x20xf32>
    %55 = vector.shape_cast %54 : vector<1x8x20xf32> to vector<8x20xf32>
    %56 = arith.mulf %51, %55 : vector<8x20xf32>
    %57 = arith.mulf %50, %52 : vector<8x20xf32>
    %58 = arith.addf %56, %57 : vector<8x20xf32>
    %59 = math.tanh %58 : vector<8x20xf32>
    %60 = arith.mulf %53, %59 : vector<8x20xf32>
    %c1_39 = arith.constant 1 : index
    %c0_40 = arith.constant 0 : index
    %c0_41 = arith.constant 0 : index
    %61 = vector.load %arg7[%c1_39, %c0_40, %c0_41] : memref<2x8x20xf32, #tpu.memory_space<vmem>>, vector<1x8x20xf32>
    %62 = vector.shape_cast %61 : vector<1x8x20xf32> to vector<8x20xf32>
    %63 = vector.shape_cast %60 : vector<8x20xf32> to vector<1x8x20xf32>
    tpu.vector_store %arg7[%c1_39, %c0_40, %c0_41], %63 {strides = array<i32>} : memref<2x8x20xf32, #tpu.memory_space<vmem>>, vector<1x8x20xf32>,
    %c1_42 = arith.constant 1 : index
    %c0_43 = arith.constant 0 : index
    %c0_44 = arith.constant 0 : index
    %64 = vector.load %arg8[%c1_42, %c0_43, %c0_44] : memref<2x8x20xf32, #tpu.memory_space<vmem>>, vector<1x8x20xf32>
    %65 = vector.shape_cast %64 : vector<1x8x20xf32> to vector<8x20xf32>
    %66 = vector.shape_cast %58 : vector<8x20xf32> to vector<1x8x20xf32>
    tpu.vector_store %arg8[%c1_42, %c0_43, %c0_44], %66 {strides = array<i32>} : memref<2x8x20xf32, #tpu.memory_space<vmem>>, vector<1x8x20xf32>,
    return
  }
}

</mosaic_0001>

<llo_original>
// kernel: lstm_block_forward.1
$region0: #{lstm_block_forward.1}
  #allocation0 [shape = 'u32[]', space=smem, size = 0x4, offset = 0x4, fixed_abs, tag = 'smem constant byte address 0x4 - core index']
  #allocation1 [shape = 'u32[144,128]{1,0:T(1,128)}', space=vmem, size = 0x12000, scoped, tag = 'internal scratch']
  #allocation2 [shape = 'f32[8,48]{1,0:T(8,128)}', space=vmem, size = 0x1000, scoped, tag = 'scratch operand']
  %s0 = inlined_call_operand.vmem [shape: f32[8,28], index: 0, kind: input, shape index: {}]
  %s1 = inlined_call_operand.vmem [shape: f32[2,8,20], index: 1, kind: input, shape index: {}]
  %s2 = inlined_call_operand.vmem [shape: f32[2,8,20], index: 2, kind: input, shape index: {}]
  %s3 = inlined_call_operand.vmem [shape: f32[48,80], index: 3, kind: input, shape index: {}]
  %s4 = inlined_call_operand.hbm [shape: f32[40,80], index: 4, kind: input, shape index: {}]
  %s5 = inlined_call_operand.vmem [shape: f32[1,80], index: 5, kind: input, shape index: {}]
  %s6 = inlined_call_operand.vmem [shape: f32[1,80], index: 6, kind: input, shape index: {}]
  %s7 = inlined_call_operand.vmem [shape: f32[2,8,20], index: 7, kind: output, shape index: {0}]
  %s8 = inlined_call_operand.vmem [shape: f32[2,8,20], index: 8, kind: output, shape index: {1}]
  %9 = xla_tuple %s7, %s8
  %s10 = sld [smem:[#allocation0]]
  $region50: #{lstm_block_forward.1} parent=0
    _
  %s12 = ssub.s32 1, %s10
  %s13 = scalar_select 0, %s12, %s10
  $region1: #{lstm_block_forward.1} parent=0
    #allocation3 [shape = 'u8[20480]{0}', space=vmem, size = 0x5000, scoped, tag = 'input window, operand 4, single buffered']
    #allocation4 [shape = 's32[1]{0}', space=sflag, size = 0x4, scoped, tag = 'scoped memory for lstm_block_forward.1']
    %14 = vsyncpa [#allocation4], 0
    // Predicated region
    $region2: #{lstm_block_forward.1} parent=1 // pred_check
      _
    $region3: #{lstm_block_forward.1} parent=1 // pred_check_branch
      %16 = sbr.rel (0) target = $region5
    $region4: #{lstm_block_forward.1} parent=1 // pred_region
      _
    $region5: #{lstm_block_forward.1} parent=1 // pred_fallthru
      _
    // Predicated region
    $region6: #{lstm_block_forward.1} parent=1 // pred_check
      _
    $region7: #{lstm_block_forward.1} parent=1 // pred_check_branch
      %18 = sbr.rel (0) target = $region9
    $region8: #{lstm_block_forward.1} parent=1 // pred_region
      _
    $region9: #{lstm_block_forward.1} parent=1 // pred_fallthru
      _
    // Predicated region
    $region10: #{lstm_block_forward.1} parent=1 // pred_check
      _
    $region11: #{lstm_block_forward.1} parent=1 // pred_check_branch
      %20 = sbr.rel (0) target = $region13
    $region12: #{lstm_block_forward.1} parent=1 // pred_region
      _
    $region13: #{lstm_block_forward.1} parent=1 // pred_fallthru
      _
    // Predicated region
    $region14: #{lstm_block_forward.1} parent=1 // pred_check
      _
    $region15: #{lstm_block_forward.1} parent=1 // pred_check_branch
      %22 = sbr.rel (0) target = $region17
    $region16: #{lstm_block_forward.1} parent=1 // pred_region
      _
    $region17: #{lstm_block_forward.1} parent=1 // pred_fallthru
      _
    // Predicated region
    $region18: #{lstm_block_forward.1} parent=1 // pred_check
      _
    $region19: #{lstm_block_forward.1} parent=1 // pred_check_branch
      %24 = sbr.rel (0) target = $region21
    $region20: #{lstm_block_forward.1} parent=1 // pred_region
      %s26 = ssub.s32 640, 640
      %27 = vsyncadd [#allocation4], %s26
      %s28 = sshll.u32 [#allocation3], 4
      %s29 = int_to_ptr.vmem [resolvable:$true] %s28
      %34 = dma.hbm_to_vmem [thread:$0]  %s4, 640, %s29, [#allocation4], 128, 128, 8
    $region21: #{lstm_block_forward.1} parent=1 // pred_fallthru
      _
    // Predicated region
    $region22: #{lstm_block_forward.1} parent=1 // pred_check
      _
    $region23: #{lstm_block_forward.1} parent=1 // pred_check_branch
      %36 = sbr.rel (0) target = $region25
    $region24: #{lstm_block_forward.1} parent=1 // pred_region
      _
    $region25: #{lstm_block_forward.1} parent=1 // pred_fallthru
      _
    // Predicated region
    $region26: #{lstm_block_forward.1} parent=1 // pred_check
      _
    $region27: #{lstm_block_forward.1} parent=1 // pred_check_branch
      %38 = sbr.rel (0) target = $region29
    $region28: #{lstm_block_forward.1} parent=1 // pred_region
      _
    $region29: #{lstm_block_forward.1} parent=1 // pred_fallthru
      _
    // Predicated region
    $region30: #{lstm_block_forward.1} parent=1 // pred_check
      _
    $region31: #{lstm_block_forward.1} parent=1 // pred_check_branch
      %40 = sbr.rel (0) target = $region33
    $region32: #{lstm_block_forward.1} parent=1 // pred_region
      %41 = dma.done [#allocation4], 640
    $region33: #{lstm_block_forward.1} parent=1 // pred_fallthru
      _
    %v42 = vld [vmem:[%s0] sm:$0xff]
    %vm43 = vcmask 228352
    %44 = vst.msk [vmem:[#allocation2] sm:$0xff] %vm43, %v42
    %v45 = vld [vmem:[%s1] sm:$0xff]
    %47 = vrot.lane.b32.xlu0 %v45, 28
    %v48 = vpop.permute.xlu0 %47
    %vm50 = vcmask 392416
    %51 = vst.msk [vmem:[#allocation2] sm:$0xff] %vm50, %v48
    %v52 = vld [vmem:[#allocation2] sm:$0xff]
    %v53 = vld [vmem:[%s3] sm:$0xff]
    %v54 = vld [vmem:[%s3 + $0x8] sm:$0xff]
    %v55 = vld [vmem:[%s3 + $0x10] sm:$0xff]
    %v56 = vld [vmem:[%s3 + $0x18] sm:$0xff]
    %v57 = vld [vmem:[%s3 + $0x20] sm:$0xff]
    %v58 = vld [vmem:[%s3 + $0x28] sm:$0xff]
    %v59 = vld [vmem:[%s5] sm:$0x1]
    %v61 = vlaneseq
    %v62 = vshrl.u32 %v61, 7
    %v63 = vsub.s32 0, %v62
    %v64 = vrot.slane %v59, %v63
    %vm66 = vcmask 392192
    %v68 = vsel %vm66, %v52, 0
    %70 = vmatprep.subr.mxu0 0.0
    %71 = vmatpush1.msra.mxu0 0.0
    %72 = vmatprep.subr.mxu0 0.0
    %73 = vmatpush1.msra.mxu0 0.0
    %74 = vmatprep.subr.mxu0 0.0
    %75 = vmatpush1.msra.mxu0 0.0
    %76 = vmatprep.subr.mxu0 0.0
    %77 = vmatpush1.msra.mxu0 0.0
    %78 = vmatprep.subr.mxu0 0.0
    %79 = vmatpush1.msra.mxu0 0.0
    %80 = vmatprep.subr.mxu0 0.0
    %81 = vmatpush1.msra.mxu0 0.0
    %82 = vmatprep.subr.mxu0 0.0
    %83 = vmatpush1.msra.mxu0 0.0
    %84 = vmatprep.subr.mxu0 0.0
    %85 = vmatpush1.msra.mxu0 0.0
    %86 = vmatprep.subr.mxu0 0.0
    %87 = vmatpush1.msra.mxu0 0.0
    %88 = vmatprep.subr.mxu0 0.0
    %89 = vmatpush1.msra.mxu0 0.0
    %90 = vmatprep.subr.mxu0 0.0
    %91 = vmatpush1.msra.mxu0 %v58
    %92 = vmatprep.subr.mxu0 0.0
    %93 = vmatpush1.msra.mxu0 %v57
    %94 = vmatprep.subr.mxu0 0.0
    %95 = vmatpush1.msra.mxu0 %v56
    %96 = vmatprep.subr.mxu0 0.0
    %97 = vmatpush1.msra.mxu0 %v55
    %98 = vmatprep.subr.mxu0 0.0
    %99 = vmatpush1.msra.mxu0 %v54
    %100 = vmatprep.subr.mxu0 0.0
    %101 = vmatpush1.msra.mxu0 %v53
    %102 = vmatprep.subr.mxu0 0.0
    %103 = vmatpush2.msra.mxu0 0.0
    %104 = vmatprep.subr.mxu0 0.0
    %105 = vmatpush2.msra.mxu0 0.0
    %106 = vmatprep.subr.mxu0 0.0
    %107 = vmatpush2.msra.mxu0 0.0
    %108 = vmatprep.subr.mxu0 0.0
    %109 = vmatpush2.msra.mxu0 0.0
    %110 = vmatprep.subr.mxu0 0.0
    %111 = vmatpush2.msra.mxu0 0.0
    %112 = vmatprep.subr.mxu0 0.0
    %113 = vmatpush2.msra.mxu0 0.0
    %114 = vmatprep.subr.mxu0 0.0
    %115 = vmatpush2.msra.mxu0 0.0
    %116 = vmatprep.subr.mxu0 0.0
    %117 = vmatpush2.msra.mxu0 0.0
    %118 = vmatprep.subr.mxu0 0.0
    %119 = vmatpush2.msra.mxu0 0.0
    %120 = vmatprep.subr.mxu0 0.0
    %121 = vmatpush2.msra.mxu0 0.0
    %122 = vmatprep.subr.mxu0 0.0
    %123 = vmatpush2.msra.mxu0 0.0
    %124 = vmatprep.subr.mxu0 0.0
    %125 = vmatpush2.msra.mxu0 0.0
    %126 = vmatprep.subr.mxu0 0.0
    %127 = vmatpush2.msra.mxu0 0.0
    %128 = vmatprep.subr.mxu0 0.0
    %129 = vmatpush2.msra.mxu0 0.0
    %130 = vmatprep.subr.mxu0 0.0
    %131 = vmatpush2.msra.mxu0 0.0
    %132 = vmatprep.subr.mxu0 0.0
    %133 = vmatpush2.msra.mxu0 0.0
    %134 = vmatprep.mubr.f32.mxu0 0.0
    %135 = vmatmul.mubr.f32.gmra.mxu0 %v68
    %v136 = vpop.f32.mrf.mxu0
    %v137 = vadd.f32 %v64, %v136
    %v138 = vpop.f32.mrf.mxu0
    %139 = vdwg.mxu0
    %v140 = vxor.u32 %v137, 2147483648
    %v141 = vmul.f32 %v140, 1.442695
    %v142 = vpow.pop %v141
    %v143 = vadd.f32 %v142, 1.0
    %v144 = vrcp.pop %v143
    %v145 = vmul.f32 1.0, %v144
    %v146 = vtanh.pop %v137
    %v147 = vld [vmem:[%s2] sm:$0xff]
    %149 = vrot.lane.b32.xlu0 %v147, 20
    %v150 = vpop.permute.xlu0 %149
    %v152 = vmul.f32 %v145, %v150
    %154 = vrot.lane.b32.xlu0 %v146, 88
    %v155 = vpop.permute.xlu0 %154
    %v157 = vmul.f32 %v145, %v155
    %159 = vrot.lane.b32.xlu0 %v157, 20
    %v160 = vpop.permute.xlu0 %159
    %v162 = vadd.f32 %v152, %v160
    %v163 = vtanh.pop %v162
    %165 = vrot.lane.b32.xlu0 %v163, 40
    %v166 = vpop.permute.xlu0 %165
    %v168 = vmul.f32 %v145, %v166
    %170 = vrot.lane.b32.xlu0 %v168, 68
    %v171 = vpop.permute.xlu0 %170
    %vm173 = vcmask 162816
    %174 = vst.msk [vmem:[%s7] sm:$0xff] %vm173, %v171
    %176 = vrot.lane.b32.xlu0 %v162, 108
    %v177 = vpop.permute.xlu0 %176
    %179 = vst.msk [vmem:[%s8] sm:$0xff] %vm173, %v177
    %180 = vst.msk [vmem:[#allocation2] sm:$0xff] %vm173, %v171
    %s181 = scalar_lea.vmem %s1, 8
    %v182 = vld [vmem:[%s181] sm:$0xff]
    %184 = vrot.lane.b32.xlu0 %v182, 20
    %v185 = vpop.permute.xlu0 %184
    %vm187 = vcmask 326816
    %188 = vst.msk [vmem:[#allocation2] sm:$0xff] %vm187, %v185
    %v189 = vld [vmem:[#allocation2] sm:$0xff]
    %v190 = vld [vmem:[#allocation3] sm:$0xff]
    %v191 = vld [vmem:[#allocation3 + $0x8] sm:$0xff]
    %v192 = vld [vmem:[#allocation3 + $0x10] sm:$0xff]
    %v193 = vld [vmem:[#allocation3 + $0x18] sm:$0xff]
    %v194 = vld [vmem:[#allocation3 + $0x20] sm:$0xff]
    %v195 = vld [vmem:[%s6] sm:$0x1]
    %v197 = vlaneseq
    %v198 = vshrl.u32 %v197, 7
    %v199 = vsub.s32 0, %v198
    %v200 = vrot.slane %v195, %v199
    %vm202 = vcmask 326656
    %v204 = vsel %vm202, %v189, 0
    %206 = vmatprep.subr.mxu0 0.0
    %207 = vmatpush1.msra.mxu0 0.0
    %208 = vmatprep.subr.mxu0 0.0
    %209 = vmatpush1.msra.mxu0 0.0
    %210 = vmatprep.subr.mxu0 0.0
    %211 = vmatpush1.msra.mxu0 0.0
    %212 = vmatprep.subr.mxu0 0.0
    %213 = vmatpush1.msra.mxu0 0.0
    %214 = vmatprep.subr.mxu0 0.0
    %215 = vmatpush1.msra.mxu0 0.0
    %216 = vmatprep.subr.mxu0 0.0
    %217 = vmatpush1.msra.mxu0 0.0
    %218 = vmatprep.subr.mxu0 0.0
    %219 = vmatpush1.msra.mxu0 0.0
    %220 = vmatprep.subr.mxu0 0.0
    %221 = vmatpush1.msra.mxu0 0.0
    %222 = vmatprep.subr.mxu0 0.0
    %223 = vmatpush1.msra.mxu0 0.0
    %224 = vmatprep.subr.mxu0 0.0
    %225 = vmatpush1.msra.mxu0 0.0
    %226 = vmatprep.subr.mxu0 0.0
    %227 = vmatpush1.msra.mxu0 0.0
    %228 = vmatprep.subr.mxu0 0.0
    %229 = vmatpush1.msra.mxu0 %v194
    %230 = vmatprep.subr.mxu0 0.0
    %231 = vmatpush1.msra.mxu0 %v193
    %232 = vmatprep.subr.mxu0 0.0
    %233 = vmatpush1.msra.mxu0 %v192
    %234 = vmatprep.subr.mxu0 0.0
    %235 = vmatpush1.msra.mxu0 %v191
    %236 = vmatprep.subr.mxu0 0.0
    %237 = vmatpush1.msra.mxu0 %v190
    %238 = vmatprep.subr.mxu0 0.0
    %239 = vmatpush2.msra.mxu0 0.0
    %240 = vmatprep.subr.mxu0 0.0
    %241 = vmatpush2.msra.mxu0 0.0
    %242 = vmatprep.subr.mxu0 0.0
    %243 = vmatpush2.msra.mxu0 0.0
    %244 = vmatprep.subr.mxu0 0.0
    %245 = vmatpush2.msra.mxu0 0.0
    %246 = vmatprep.subr.mxu0 0.0
    %247 = vmatpush2.msra.mxu0 0.0
    %248 = vmatprep.subr.mxu0 0.0
    %249 = vmatpush2.msra.mxu0 0.0
    %250 = vmatprep.subr.mxu0 0.0
    %251 = vmatpush2.msra.mxu0 0.0
    %252 = vmatprep.subr.mxu0 0.0
    %253 = vmatpush2.msra.mxu0 0.0
    %254 = vmatprep.subr.mxu0 0.0
    %255 = vmatpush2.msra.mxu0 0.0
    %256 = vmatprep.subr.mxu0 0.0
    %257 = vmatpush2.msra.mxu0 0.0
    %258 = vmatprep.subr.mxu0 0.0
    %259 = vmatpush2.msra.mxu0 0.0
    %260 = vmatprep.subr.mxu0 0.0
    %261 = vmatpush2.msra.mxu0 0.0
    %262 = vmatprep.subr.mxu0 0.0
    %263 = vmatpush2.msra.mxu0 0.0
    %264 = vmatprep.subr.mxu0 0.0
    %265 = vmatpush2.msra.mxu0 0.0
    %266 = vmatprep.subr.mxu0 0.0
    %267 = vmatpush2.msra.mxu0 0.0
    %268 = vmatprep.subr.mxu0 0.0
    %269 = vmatpush2.msra.mxu0 0.0
    %270 = vmatprep.mubr.f32.mxu0 0.0
    %271 = vmatmul.mubr.f32.gmra.mxu0 %v204
    %v272 = vpop.f32.mrf.mxu0
    %v273 = vadd.f32 %v200, %v272
    %v274 = vpop.f32.mrf.mxu0
    %275 = vdwg.mxu0
    %v276 = vxor.u32 %v273, 2147483648
    %v277 = vmul.f32 %v276, 1.442695
    %v278 = vpow.pop %v277
    %v279 = vadd.f32 %v278, 1.0
    %v280 = vrcp.pop %v279
    %v281 = vmul.f32 1.0, %v280
    %v282 = vtanh.pop %v273
    %s283 = scalar_lea.vmem %s2, 8
    %v284 = vld [vmem:[%s283] sm:$0xff]
    %286 = vrot.lane.b32.xlu0 %v284, 20
    %v287 = vpop.permute.xlu0 %286
    %v289 = vmul.f32 %v281, %v287
    %291 = vrot.lane.b32.xlu0 %v282, 88
    %v292 = vpop.permute.xlu0 %291
    %v294 = vmul.f32 %v281, %v292
    %296 = vrot.lane.b32.xlu0 %v294, 20
    %v297 = vpop.permute.xlu0 %296
    %v299 = vadd.f32 %v289, %v297
    %v300 = vtanh.pop %v299
    %302 = vrot.lane.b32.xlu0 %v300, 40
    %v303 = vpop.permute.xlu0 %302
    %v305 = vmul.f32 %v281, %v303
    %307 = vrot.lane.b32.xlu0 %v305, 68
    %v308 = vpop.permute.xlu0 %307
    %s310 = scalar_lea.vmem %s7, 8
    %311 = vst.msk [vmem:[%s310] sm:$0xff] %vm173, %v308
    %313 = vrot.lane.b32.xlu0 %v299, 108
    %v314 = vpop.permute.xlu0 %313
    %s316 = scalar_lea.vmem %s8, 8
    %317 = vst.msk [vmem:[%s316] sm:$0xff] %vm173, %v314
    // Predicated region
    $region34: #{lstm_block_forward.1} parent=1 // pred_check
      _
    $region35: #{lstm_block_forward.1} parent=1 // pred_check_branch
      %319 = sbr.rel (0) target = $region37
    $region36: #{lstm_block_forward.1} parent=1 // pred_region
      _
    $region37: #{lstm_block_forward.1} parent=1 // pred_fallthru
      _
    // Predicated region
    $region38: #{lstm_block_forward.1} parent=1 // pred_check
      _
    $region39: #{lstm_block_forward.1} parent=1 // pred_check_branch
      %321 = sbr.rel (0) target = $region41
    $region40: #{lstm_block_forward.1} parent=1 // pred_region
      _
    $region41: #{lstm_block_forward.1} parent=1 // pred_fallthru
      _
    // Predicated region
    $region42: #{lstm_block_forward.1} parent=1 // pred_check
      _
    $region43: #{lstm_block_forward.1} parent=1 // pred_check_branch
      %323 = sbr.rel (0) target = $region45
    $region44: #{lstm_block_forward.1} parent=1 // pred_region
      _
    $region45: #{lstm_block_forward.1} parent=1 // pred_fallthru
      _
    // Predicated region
    $region46: #{lstm_block_forward.1} parent=1 // pred_check
      _
    $region47: #{lstm_block_forward.1} parent=1 // pred_check_branch
      %325 = sbr.rel (0) target = $region49
    $region48: #{lstm_block_forward.1} parent=1 // pred_region
      _
    $region49: #{lstm_block_forward.1} parent=1 // pred_fallthru
      _
    %326 = vsyncpa [#allocation4], 1

</llo_original>
